<compile_context>
chip_gen: v6e
topology: v6e:2x2x1
jax: 0.10.0
libtpu: 0.0.40
codegen_flags: <defaults>
</compile_context>

<pallas_src>
import math
import functools

import jax
import jax.numpy as jnp
from jax.experimental import pallas as pl
from jax.experimental.pallas import tpu as pltpu


# StyleGAN bias_act activation table (subset): (fn, default act gain)
_ACTS = {
    "linear": (lambda v: v, 1.0),
    "relu": (lambda v: jnp.maximum(v, 0.0), math.sqrt(2.0)),
    "lrelu": (lambda v: jnp.where(v >= 0.0, v, 0.2 * v), math.sqrt(2.0)),
    "tanh": (jnp.tanh, 1.0),
    "sigmoid": (lambda v: 1.0 / (1.0 + jnp.exp(-v)), 1.0),
}


def _round_up(a, b):
    return (a + b - 1) // b * b


def _cdiv(a, b):
    return (a + b - 1) // b


def _vmem_capacity_bytes():
    """Physical VMEM per TensorCore; conservative (v7x-safe) fallback."""
    try:
        return int(pltpu.get_tpu_info().vmem_capacity_bytes)
    except Exception:
        return 64 * 1024 * 1024


def _largest_tile(total, upper):
    """Largest multiple of 128 that divides `total` and is <= upper.

    `total` is always a multiple of 128 here, so the loop terminates at 128.
    """
    cand = (min(upper, total) // 128) * 128
    while cand > 128 and total % cand != 0:
        cand -= 128
    return max(cand, 128)


def _apply_bias_act(y_f32, b_f32, scale, act_name):
    """Epilogue in f32: equalized-LR scale, bias add, activation, act gain."""
    act_fn, act_gain = _ACTS[act_name]
    y = y_f32 * scale + b_f32
    y = act_fn(y)
    if act_gain != 1.0:
        y = y * act_gain
    return y


def _linear_kernel_single_k(x_ref, w_ref, b_ref, o_ref, *, scale, act_name):
    """K fits one tile: dot + epilogue straight into the output (no scratch).

    x_ref: (tm, Kp)   bf16    w_ref: (Kp, tn) bf16   (canonical MXU layout)
    b_ref: (1, tn)    f32     o_ref: (tm, tn)
    """
    y = jnp.dot(x_ref[...], w_ref[...], preferred_element_type=jnp.float32)
    o_ref[...] = _apply_bias_act(y, b_ref[...], scale, act_name).astype(o_ref.dtype)


def _linear_kernel_acc(x_ref, w_ref, b_ref, o_ref, acc_ref, *, scale, act_name):
    """Multi-K-tile reduction with a resident f32 accumulator.

    x_ref: (tm, tk)   w_ref: (tk, tn)   b_ref: (1, tn)
    o_ref: (tm, tn)   acc_ref: (tm, tn) f32 scratch (persists across K steps)
    """
    k = pl.program_id(2)

    @pl.when(k == 0)
    def _():
        acc_ref[...] = jnp.zeros_like(acc_ref)

    acc_ref[...] += jnp.dot(x_ref[...], w_ref[...],
                            preferred_element_type=jnp.float32)

    @pl.when(k == pl.num_programs(2) - 1)
    def _():
        o_ref[...] = _apply_bias_act(acc_ref[...], b_ref[...],
                                     scale, act_name).astype(o_ref.dtype)


class PallasLinear:
    """Pallas equivalent of StyleGAN3 Linear (equalized-LR linear + bias_act).

    Weight is transposed / cast / padded ONCE at construction (it is a reused
    parameter), so per-call HBM traffic is just x + one streaming pass over the
    prepared bf16 weight.
    """

    def __init__(self, weight, bias, *, gain=1.0, act_name="linear",
                 compute_dtype=jnp.bfloat16):
        # weight: (out_features, in_features) = (N, K), native PyTorch layout.
        weight = jnp.asarray(weight)
        N, K = weight.shape
        self.N, self.K = N, K
        self.act_name = act_name
        self.compute_dtype = compute_dtype
        self.scale = gain / math.sqrt(K)          # gain / weight[0].numel() ** 0.5

        # ---- per-generation VMEM budget & tile caps -------------------------
        vmem_cap = _vmem_capacity_bytes()
        self.vmem_budget = int(0.75 * vmem_cap)    # ~48 MiB on v7x, ~96 MiB on v5e/v6e
        big_vmem = vmem_cap >= 100 * 1024 * 1024   # v5e/v6e (128 MiB) vs v7x (64 MiB)
        self.tm_cap = 1024 if big_vmem else 512
        tn_cap = 2048 if big_vmem else 1024
        tk_cap = 2048

        self.tn = min(_round_up(N, 128), tn_cap)
        self.tk = min(_round_up(K, 128), tk_cap)
        self.Np = _round_up(N, self.tn)
        self.Kp = _round_up(K, self.tk)

        # ---- one-time weight prep: transpose to (K, N), cast to bf16, pad ---
        w_t = weight.T.astype(compute_dtype)
        if (self.Kp, self.Np) != (K, N):
            w_t = jnp.pad(w_t, ((0, self.Kp - K), (0, self.Np - N)))
        self.w_t = w_t

        if bias is None:
            b = jnp.zeros((1, self.Np), dtype=jnp.float32)
        else:
            b = jnp.asarray(bias, dtype=jnp.float32).reshape(1, N)
            if self.Np != N:
                b = jnp.pad(b, ((0, 0), (0, self.Np - N)))
        self.b = b

    def __call__(self, x):
        # Support (..., in_features) like F.linear.
        lead = x.shape[:-1]
        K = x.shape[-1]
        assert K == self.K, f"expected in_features={self.K}, got {K}"
        x2d = x.reshape(-1, K)
        M = x2d.shape[0]
        out_dtype = x.dtype

        csz = jnp.dtype(self.compute_dtype).itemsize
        osz = jnp.dtype(out_dtype).itemsize
        Np, Kp = self.Np, self.Kp
        tn, tk = self.tn, self.tk

        # ---- per-call M tile (multiple of 16 for full bf16 sublane packing) -
        tm = min(_round_up(max(M, 1), 16), self.tm_cap)

        # ---- guarantee >=2 blocks on a parallel axis (v7x: 2 TensorCores) ---
        if _cdiv(M, tm) * (Np // tn) < 2 and Np >= 256:
            tn = _largest_tile(Np, Np // 2)

        # ---- shrink guard: keep 1.5x working set within the per-gen budget --
        def _work_bytes(tm_, tn_, tk_):
            w = 2 * (tm_ * tk_ + tk_ * tn_) * csz   # x + weight tiles, double-buffered
            w += 2 * tn_ * 4                        # bias tiles
            w += 2 * tm_ * tn_ * osz                # output tiles
            w += tm_ * tn_ * 4                      # f32 accumulator (conservative)
            return w

        while 1.5 * _work_bytes(tm, tn, tk) > self.vmem_budget:
            if tk > 512:
                tk = _largest_tile(Kp, tk // 2)
            elif tn > 256:
                tn = _largest_tile(Np, tn // 2)
            elif tm > 16:
                tm = max(16, (tm // 32) * 16)
            else:
                break

        Mp = _round_up(max(M, 1), tm)
        single_k = (Kp // tk) == 1

        # ---- pad / cast x (activation: only per-call operand touched) -------
        xc = x2d if x2d.dtype == self.compute_dtype else x2d.astype(self.compute_dtype)
        if (Mp, Kp) != (M, K):
            xc = jnp.pad(xc, ((0, Mp - M), (0, Kp - K)))

        work = _work_bytes(tm, tn, tk)
        vmem_limit = min(self.vmem_budget,
                         max(16 * 1024 * 1024, int(2.0 * work)))

        cost = pl.CostEstimate(
            flops=2 * M * self.N * K,
            transcendentals=(M * self.N if self.act_name in ("tanh", "sigmoid") else 0),
            bytes_accessed=(Mp * Kp * csz * (Np // tn)       # x re-read per N tile
                            + Kp * Np * csz * (Mp // tm)     # weight re-read per M tile
                            + Mp * Np * osz),                # output write
        )

        if single_k:
            kernel = functools.partial(_linear_kernel_single_k,
                                       scale=self.scale, act_name=self.act_name)
            grid_spec = pltpu.PrefetchScalarGridSpec(
                num_scalar_prefetch=0,
                grid=(Mp // tm, Np // tn),
                in_specs=[
                    pl.BlockSpec((tm, Kp), lambda i, j: (i, 0)),   # x
                    pl.BlockSpec((Kp, tn), lambda i, j: (0, j)),   # weight (K, N)
                    pl.BlockSpec((1, tn), lambda i, j: (0, j)),    # bias
                ],
                out_specs=pl.BlockSpec((tm, tn), lambda i, j: (i, j)),
                scratch_shapes=[],
            )
            dims = ("parallel", "parallel")
        else:
            kernel = functools.partial(_linear_kernel_acc,
                                       scale=self.scale, act_name=self.act_name)
            grid_spec = pltpu.PrefetchScalarGridSpec(
                num_scalar_prefetch=0,
                grid=(Mp // tm, Np // tn, Kp // tk),
                in_specs=[
                    pl.BlockSpec((tm, tk), lambda i, j, k: (i, k)),   # x
                    pl.BlockSpec((tk, tn), lambda i, j, k: (k, j)),   # weight (K, N)
                    pl.BlockSpec((1, tn), lambda i, j, k: (0, j)),    # bias
                ],
                out_specs=pl.BlockSpec((tm, tn), lambda i, j, k: (i, j)),
                scratch_shapes=[pltpu.VMEM((tm, tn), jnp.float32)],
            )
            dims = ("parallel", "parallel", "arbitrary")

        out = pl.pallas_call(
            kernel,
            out_shape=jax.ShapeDtypeStruct((Mp, Np), out_dtype),
            grid_spec=grid_spec,
            compiler_params=pltpu.CompilerParams(
                dimension_semantics=dims,
                vmem_limit_bytes=vmem_limit,
            ),
            cost_estimate=cost,
        )(xc, self.w_t, self.b)

        if (Mp, Np) != (M, self.N):
            out = out[:M, :self.N]
        return out.reshape(*lead, self.N)


def _reference(x, weight, bias, scale, act_name):
    """Plain-JAX reference with the same bf16 operand rounding, f32 accumulation."""
    x32 = x.astype(jnp.bfloat16).astype(jnp.float32)
    w32 = weight.astype(jnp.bfloat16).astype(jnp.float32)
    y = jnp.matmul(x32, w32.T, precision=jax.lax.Precision.HIGHEST) * scale
    if bias is not None:
        y = y + bias.astype(jnp.float32)[None, :]
    act_fn, act_gain = _ACTS[act_name]
    return act_fn(y) * act_gain


if __name__ == "__main__":
    key = jax.random.PRNGKey(0)
    k1, k2, k3, k4, k5 = jax.random.split(key, 5)

    # ---- Test 1: small mapping-style layer, single K tile, linear act -------
    M, K, N = 8, 256, 128
    x = jax.random.normal(k1, (M, K), dtype=jnp.float32)
    weight = jax.random.normal(k2, (N, K), dtype=jnp.float32)
    bias = jnp.zeros((N,), dtype=jnp.float32)

    layer = PallasLinear(weight, bias, gain=1.0, act_name="linear")
    y = jax.block_until_ready(layer(x))
    assert y.shape == (M, N)

    y_ref = _reference(x, weight, bias, layer.scale, "linear")
    assert jnp.allclose(y.astype(jnp.float32), y_ref, atol=2e-3, rtol=2e-3), \
        "test1: mismatch vs bf16-operand reference"

    y_ref_f32 = x @ (weight * layer.scale).T + bias[None, :]
    assert jnp.allclose(y.astype(jnp.float32), y_ref_f32, atol=5e-2, rtol=5e-2), \
        "test1: mismatch vs f32 reference"

    # ---- Test 2: multi-K-tile reduction + lrelu + parallel N split ----------
    M2, K2, N2 = 8, 4096, 512
    x2 = jax.random.normal(k3, (M2, K2), dtype=jnp.float32)
    weight2 = jax.random.normal(k4, (N2, K2), dtype=jnp.float32)
    bias2 = 0.1 * jax.random.normal(k5, (N2,), dtype=jnp.float32)

    layer2 = PallasLinear(weight2, bias2, gain=1.0, act_name="lrelu")
    y2 = jax.block_until_ready(layer2(x2))
    assert y2.shape == (M2, N2)

    y2_ref = _reference(x2, weight2, bias2, layer2.scale, "lrelu")
    assert jnp.allclose(y2.astype(jnp.float32), y2_ref, atol=2e-3, rtol=2e-3), \
        "test2: mismatch vs bf16-operand reference"

    print("KERNEL_OK")
</pallas_src>

<mosaic_0001>
module attributes {stable_mosaic.version = 11 : i64} {
  func.func @_linear_kernel_single_k(%arg0: i32, %arg1: i32, %arg2: memref<16x256xbf16, #tpu.memory_space<vmem>>, %arg3: memref<256x128xbf16, #tpu.memory_space<vmem>>, %arg4: memref<1x128xf32, #tpu.memory_space<vmem>>, %arg5: memref<16x128xf32, #tpu.memory_space<vmem>>) attributes {dimension_semantics = [#tpu.dimension_semantics<parallel>, #tpu.dimension_semantics<parallel>], iteration_bounds = array<i64: 1, 1>, scalar_prefetch = 0 : i64, scratch_operands = 0 : i64, tpu.core_type = #tpu.core_type<tc>, window_params = [{transform_indices = @transform_0, window_bounds = array<i64: 16, 256>}, {transform_indices = @transform_1, window_bounds = array<i64: 256, 128>}, {transform_indices = @transform_2, window_bounds = array<i64: 1, 128>}, {transform_indices = @transform_3, window_bounds = array<i64: 16, 128>}]} {
    %c0 = arith.constant 0 : index
    %c0_0 = arith.constant 0 : index
    %0 = vector.load %arg2[%c0, %c0_0] : memref<16x256xbf16, #tpu.memory_space<vmem>>, vector<16x256xbf16>
    %c0_1 = arith.constant 0 : index
    %c0_2 = arith.constant 0 : index
    %1 = vector.load %arg3[%c0_1, %c0_2] : memref<256x128xbf16, #tpu.memory_space<vmem>>, vector<256x128xbf16>
    %cst = arith.constant dense<0.000000e+00> : vector<16x128xf32>
    %2 = tpu.matmul %0, %1, %cst {dimension_numbers = #tpu.dot_dimension_numbers<[1], [0], [0], [1], [0, 0, 1, 1], [], []>} : vector<16x256xbf16>, vector<256x128xbf16>, vector<16x128xf32> -> vector<16x128xf32>
    %c0_3 = arith.constant 0 : index
    %c0_4 = arith.constant 0 : index
    %3 = vector.load %arg4[%c0_3, %c0_4] : memref<1x128xf32, #tpu.memory_space<vmem>>, vector<1x128xf32>
    %cst_5 = arith.constant 6.250000e-02 : f32
    %4 = vector.broadcast %cst_5 : f32 to vector<16x128xf32>
    %5 = arith.mulf %2, %4 : vector<16x128xf32>
    %6 = vector.broadcast %3 : vector<1x128xf32> to vector<16x128xf32>
    %7 = arith.addf %5, %6 : vector<16x128xf32>
    %c0_6 = arith.constant 0 : index
    %c0_7 = arith.constant 0 : index
    %8 = vector.load %arg5[%c0_6, %c0_7] : memref<16x128xf32, #tpu.memory_space<vmem>>, vector<16x128xf32>
    tpu.vector_store %arg5[%c0_6, %c0_7], %7 {strides = array<i32>} : memref<16x128xf32, #tpu.memory_space<vmem>>, vector<16x128xf32>,
    return
  }
  func.func @transform_0(%arg0: i32, %arg1: i32) -> (i32, i32) {
    %c0_i32 = arith.constant 0 : i32
    %c0_i32_0 = arith.constant 0 : i32
    return %arg0, %c0_i32 : i32, i32
  }
  func.func @transform_1(%arg0: i32, %arg1: i32) -> (i32, i32) {
    %c0_i32 = arith.constant 0 : i32
    %c0_i32_0 = arith.constant 0 : i32
    return %c0_i32, %arg1 : i32, i32
  }
  func.func @transform_2(%arg0: i32, %arg1: i32) -> (i32, i32) {
    %c0_i32 = arith.constant 0 : i32
    %c0_i32_0 = arith.constant 0 : i32
    return %c0_i32, %arg1 : i32, i32
  }
  func.func @transform_3(%arg0: i32, %arg1: i32) -> (i32, i32) {
    %c0_i32 = arith.constant 0 : i32
    return %arg0, %arg1 : i32, i32
  }
}

</mosaic_0001>

<llo_original>
// kernel: tpu_custom_call.1
$region0: #{tpu_custom_call.1}
  #allocation0 [shape = 'u32[]', space=smem, size = 0x4, offset = 0x4, fixed_abs, tag = 'smem constant byte address 0x4 - core index']
  #allocation1 [shape = 'u32[144,128]{1,0:T(1,128)}', space=vmem, size = 0x12000, scoped, tag = 'internal scratch']
  %s0 = inlined_call_operand.hbm [shape: bf16[16,256], index: 0, kind: input, shape index: {}]
  %s1 = inlined_call_operand.hbm [shape: bf16[256,128], index: 1, kind: input, shape index: {}]
  %s2 = inlined_call_operand.vmem [shape: f32[1,128], index: 2, kind: input, shape index: {}]
  %s3 = inlined_call_operand.hbm [shape: f32[16,128], index: 3, kind: output, shape index: {}]
  %s4 = sld [smem:[#allocation0]]
  $region30: #{tpu_custom_call.1} parent=0
    _
  %s6 = ssub.s32 1, %s4
  %s7 = scalar_select 0, %s6, %s4
  $region1: #{tpu_custom_call.1} parent=0
    #allocation2 [shape = 'u8[8192]{0}', space=vmem, size = 0x2000, scoped, tag = 'input window, operand 0, single buffered']
    #allocation3 [shape = 's32[1]{0}', space=sflag, size = 0x4, scoped, tag = 'scoped memory for tpu_custom_call.1']
    #allocation4 [shape = 's32[1]{0}', space=sflag, size = 0x4, scoped, tag = 'scoped memory for tpu_custom_call.1']
    #allocation5 [shape = 'u8[65536]{0}', space=vmem, size = 0x10000, scoped, tag = 'input window, operand 1, single buffered']
    #allocation6 [shape = 's32[1]{0}', space=sflag, size = 0x4, scoped, tag = 'scoped memory for tpu_custom_call.1']
    #allocation7 [shape = 'u8[8192]{0}', space=vmem, size = 0x2000, scoped, tag = 'output window, operand 0, single buffered']
    %8 = vsyncpa [#allocation3], 0
    %9 = vsyncpa [#allocation6], 0
    %10 = vsyncpa [#allocation4], 0
    // Predicated region
    $region2: #{tpu_custom_call.1} parent=1 // pred_check
      _
    $region3: #{tpu_custom_call.1} parent=1 // pred_check_branch
      %12 = sbr.rel (0) target = $region5
    $region4: #{tpu_custom_call.1} parent=1 // pred_region
      %s14 = ssub.s32 256, 256
      %15 = vsyncadd [#allocation3], %s14
      %s16 = sshll.u32 [#allocation2], 4
      %s17 = int_to_ptr.vmem [resolvable:$true] %s16
      %22 = dma.hbm_to_vmem [thread:$0]  %s0, 256, %s17, [#allocation3], 128, 128, 8
    $region5: #{tpu_custom_call.1} parent=1 // pred_fallthru
      _
    // Predicated region
    $region6: #{tpu_custom_call.1} parent=1 // pred_check
      _
    $region7: #{tpu_custom_call.1} parent=1 // pred_check_branch
      %24 = sbr.rel (0) target = $region9
    $region8: #{tpu_custom_call.1} parent=1 // pred_region
      %s26 = ssub.s32 2048, 2048
      %27 = vsyncadd [#allocation6], %s26
      %s28 = sshll.u32 [#allocation5], 4
      %s29 = int_to_ptr.vmem [resolvable:$true] %s28
      %34 = dma.hbm_to_vmem [thread:$0]  %s1, 2048, %s29, [#allocation6], 64, 64, 4
    $region9: #{tpu_custom_call.1} parent=1 // pred_fallthru
      _
    // Predicated region
    $region10: #{tpu_custom_call.1} parent=1 // pred_check
      _
    $region11: #{tpu_custom_call.1} parent=1 // pred_check_branch
      %36 = sbr.rel (0) target = $region13
    $region12: #{tpu_custom_call.1} parent=1 // pred_region
      _
    $region13: #{tpu_custom_call.1} parent=1 // pred_fallthru
      _
    // Predicated region
    $region14: #{tpu_custom_call.1} parent=1 // pred_check
      _
    $region15: #{tpu_custom_call.1} parent=1 // pred_check_branch
      %38 = sbr.rel (0) target = $region17
    $region16: #{tpu_custom_call.1} parent=1 // pred_region
      %39 = dma.done [#allocation3], 256
    $region17: #{tpu_custom_call.1} parent=1 // pred_fallthru
      _
    // Predicated region
    $region18: #{tpu_custom_call.1} parent=1 // pred_check
      _
    $region19: #{tpu_custom_call.1} parent=1 // pred_check_branch
      %41 = sbr.rel (0) target = $region21
    $region20: #{tpu_custom_call.1} parent=1 // pred_region
      %42 = dma.done [#allocation6], 2048
    $region21: #{tpu_custom_call.1} parent=1 // pred_fallthru
      _
    %v44 = vld [vmem:[#allocation2] sm:$0xff]
    %v45 = vld [vmem:[#allocation2 + $0x8] sm:$0xff]
    %v46 = vld [vmem:[#allocation5] sm:$0xf]
    %v47 = vld [vmem:[#allocation5 + $0x4] sm:$0xf]
    %v48 = vld [vmem:[#allocation5 + $0x8] sm:$0xf]
    %v49 = vld [vmem:[#allocation5 + $0xc] sm:$0xf]
    %v50 = vld [vmem:[#allocation5 + $0x10] sm:$0xf]
    %v51 = vld [vmem:[#allocation5 + $0x14] sm:$0xf]
    %v52 = vld [vmem:[#allocation5 + $0x18] sm:$0xf]
    %v53 = vld [vmem:[#allocation5 + $0x1c] sm:$0xf]
    %v54 = vld [vmem:[#allocation5 + $0x20] sm:$0xf]
    %v55 = vld [vmem:[#allocation5 + $0x24] sm:$0xf]
    %v56 = vld [vmem:[#allocation5 + $0x28] sm:$0xf]
    %v57 = vld [vmem:[#allocation5 + $0x2c] sm:$0xf]
    %v58 = vld [vmem:[#allocation5 + $0x30] sm:$0xf]
    %v59 = vld [vmem:[#allocation5 + $0x34] sm:$0xf]
    %v60 = vld [vmem:[#allocation5 + $0x38] sm:$0xf]
    %v61 = vld [vmem:[#allocation5 + $0x3c] sm:$0xf]
    %v62 = vld [vmem:[#allocation5 + $0x40] sm:$0xf]
    %v63 = vld [vmem:[#allocation5 + $0x44] sm:$0xf]
    %v64 = vld [vmem:[#allocation5 + $0x48] sm:$0xf]
    %v65 = vld [vmem:[#allocation5 + $0x4c] sm:$0xf]
    %v66 = vld [vmem:[#allocation5 + $0x50] sm:$0xf]
    %v67 = vld [vmem:[#allocation5 + $0x54] sm:$0xf]
    %v68 = vld [vmem:[#allocation5 + $0x58] sm:$0xf]
    %v69 = vld [vmem:[#allocation5 + $0x5c] sm:$0xf]
    %v70 = vld [vmem:[#allocation5 + $0x60] sm:$0xf]
    %v71 = vld [vmem:[#allocation5 + $0x64] sm:$0xf]
    %v72 = vld [vmem:[#allocation5 + $0x68] sm:$0xf]
    %v73 = vld [vmem:[#allocation5 + $0x6c] sm:$0xf]
    %v74 = vld [vmem:[#allocation5 + $0x70] sm:$0xf]
    %v75 = vld [vmem:[#allocation5 + $0x74] sm:$0xf]
    %v76 = vld [vmem:[#allocation5 + $0x78] sm:$0xf]
    %v77 = vld [vmem:[#allocation5 + $0x7c] sm:$0xf]
    %v80 = vunpack.c.l.b16 %v44
    %v81 = vunpack.c.h.b16 %v44
    %v82 = vunpack.c.l.b16 %v45
    %v83 = vunpack.c.h.b16 %v45
    %v84 = vpack.c.b16 %v82, %v80
    %v85 = vpack.c.b16 %v83, %v81
    %v120 = vunpack.c.l.b16 %v46
    %v121 = vunpack.c.l.b16 %v47
    %v122 = vunpack.c.l.b16 %v48
    %v123 = vunpack.c.l.b16 %v49
    %v124 = vunpack.c.l.b16 %v50
    %v125 = vunpack.c.l.b16 %v51
    %v126 = vunpack.c.l.b16 %v52
    %v127 = vunpack.c.l.b16 %v53
    %v128 = vunpack.c.l.b16 %v54
    %v129 = vunpack.c.l.b16 %v55
    %v130 = vunpack.c.l.b16 %v56
    %v131 = vunpack.c.l.b16 %v57
    %v132 = vunpack.c.l.b16 %v58
    %v133 = vunpack.c.l.b16 %v59
    %v134 = vunpack.c.l.b16 %v60
    %v135 = vunpack.c.l.b16 %v61
    %v136 = vunpack.c.l.b16 %v62
    %v137 = vunpack.c.l.b16 %v63
    %v138 = vunpack.c.l.b16 %v64
    %v139 = vunpack.c.l.b16 %v65
    %v140 = vunpack.c.l.b16 %v66
    %v141 = vunpack.c.l.b16 %v67
    %v142 = vunpack.c.l.b16 %v68
    %v143 = vunpack.c.l.b16 %v69
    %v144 = vunpack.c.l.b16 %v70
    %v145 = vunpack.c.l.b16 %v71
    %v146 = vunpack.c.l.b16 %v72
    %v147 = vunpack.c.l.b16 %v73
    %v148 = vunpack.c.l.b16 %v74
    %v149 = vunpack.c.l.b16 %v75
    %v150 = vunpack.c.l.b16 %v76
    %v151 = vunpack.c.l.b16 %v77
    %v152 = vpack.c.b16 %v121, %v120
    %v153 = vpack.c.b16 %v123, %v122
    %v154 = vpack.c.b16 %v125, %v124
    %v155 = vpack.c.b16 %v127, %v126
    %v156 = vpack.c.b16 %v129, %v128
    %v157 = vpack.c.b16 %v131, %v130
    %v158 = vpack.c.b16 %v133, %v132
    %v159 = vpack.c.b16 %v135, %v134
    %v160 = vpack.c.b16 %v137, %v136
    %v161 = vpack.c.b16 %v139, %v138
    %v162 = vpack.c.b16 %v141, %v140
    %v163 = vpack.c.b16 %v143, %v142
    %v164 = vpack.c.b16 %v145, %v144
    %v165 = vpack.c.b16 %v147, %v146
    %v166 = vpack.c.b16 %v149, %v148
    %v167 = vpack.c.b16 %v151, %v150
    %184 = vmatprep.subr.bf16.mxu0 0
    %185 = vmatpush1.bf16.msra.mxu0 %v159
    %186 = vmatprep.subr.bf16.mxu0 0
    %187 = vmatpush1.bf16.msra.mxu0 %v158
    %188 = vmatprep.subr.bf16.mxu0 0
    %189 = vmatpush1.bf16.msra.mxu0 %v157
    %190 = vmatprep.subr.bf16.mxu0 0
    %191 = vmatpush1.bf16.msra.mxu0 %v156
    %192 = vmatprep.subr.bf16.mxu0 0
    %193 = vmatpush1.bf16.msra.mxu0 %v155
    %194 = vmatprep.subr.bf16.mxu0 0
    %195 = vmatpush1.bf16.msra.mxu0 %v154
    %196 = vmatprep.subr.bf16.mxu0 0
    %197 = vmatpush1.bf16.msra.mxu0 %v153
    %198 = vmatprep.subr.bf16.mxu0 0
    %199 = vmatpush1.bf16.msra.mxu0 %v152
    %200 = vmatprep.subr.bf16.mxu0 0
    %201 = vmatpush2.bf16.msra.mxu0 %v167
    %202 = vmatprep.subr.bf16.mxu0 0
    %203 = vmatpush2.bf16.msra.mxu0 %v166
    %204 = vmatprep.subr.bf16.mxu0 0
    %205 = vmatpush2.bf16.msra.mxu0 %v165
    %206 = vmatprep.subr.bf16.mxu0 0
    %207 = vmatpush2.bf16.msra.mxu0 %v164
    %208 = vmatprep.subr.bf16.mxu0 0
    %209 = vmatpush2.bf16.msra.mxu0 %v163
    %210 = vmatprep.subr.bf16.mxu0 0
    %211 = vmatpush2.bf16.msra.mxu0 %v162
    %212 = vmatprep.subr.bf16.mxu0 0
    %213 = vmatpush2.bf16.msra.mxu0 %v161
    %214 = vmatprep.subr.bf16.mxu0 0
    %215 = vmatpush2.bf16.msra.mxu0 %v160
    %216 = vmatprep.mubr.bf16.mxu0 %v85
    %217 = vmatmul.mubr.bf16.gmra.mxu0 %v84
    %v218 = vpop.f32.mrf.mxu0
    %v219 = vadd.f32 0.0, %v218
    %v220 = vpop.f32.mrf.mxu0
    %v221 = vpop.f32.mrf.mxu0
    %v222 = vadd.f32 0.0, %v221
    %v223 = vpop.f32.mrf.mxu0
    %224 = vdwg.mxu0
    %v225 = vld [vmem:[%s2] sm:$0x1]
    %v226 = vmul.f32 %v219, 0.0625
    %v227 = vmul.f32 %v222, 0.0625
    %v229 = vlaneseq
    %v230 = vshrl.u32 %v229, 7
    %v231 = vsub.s32 0, %v230
    %v232 = vrot.slane %v225, %v231
    %v234 = vadd.f32 %v226, %v232
    %v235 = vadd.f32 %v227, %v232
    %236 = vst [vmem:[#allocation7] sm:$0xff] %v234
    %237 = vst [vmem:[#allocation7 + $0x8] sm:$0xff] %v235
    // Predicated region
    $region22: #{tpu_custom_call.1} parent=1 // pred_check
      _
    $region23: #{tpu_custom_call.1} parent=1 // pred_check_branch
      %239 = sbr.rel (0) target = $region25
    $region24: #{tpu_custom_call.1} parent=1 // pred_region
      %s241 = ssub.s32 256, 256
      %242 = vsyncadd [#allocation4], %s241
      %s243 = sshll.u32 [#allocation7], 4
      %s244 = int_to_ptr.vmem [resolvable:$true] %s243
      %249 = dma.vmem_to_hbm [thread:$0]  %s244, 256, %s3, [#allocation4], 128, 128, 8
    $region25: #{tpu_custom_call.1} parent=1 // pred_fallthru
      _
    // Predicated region
    $region26: #{tpu_custom_call.1} parent=1 // pred_check
      _
    $region27: #{tpu_custom_call.1} parent=1 // pred_check_branch
      %251 = sbr.rel (0) target = $region29
    $region28: #{tpu_custom_call.1} parent=1 // pred_region
      %252 = dma.done [#allocation4], 256
    $region29: #{tpu_custom_call.1} parent=1 // pred_fallthru
      _
    %253 = vsyncpa [#allocation3], 1
    %254 = vsyncpa [#allocation6], 1
    %255 = vsyncpa [#allocation4], 1

</llo_original>
